<compile_context>
chip_gen: v7x
topology: tpu7x:2x2x1
jax: 0.10.0
libtpu: 0.0.40
codegen_flags: <defaults>
</compile_context>

<pallas_src>
import functools

import jax
import jax.numpy as jnp
from jax.experimental import pallas as pl
from jax.experimental.pallas import tpu as pltpu


# --------------------------------------------------------------------------- #
# Kernel
# --------------------------------------------------------------------------- #
def _adaln_modulate_kernel(x_ref, ada_ref, out_ref, *, eps):
    # x_ref:   (TL, C)  current (batch-squeezed) sequence tile
    # ada_ref: (2, C)   fp32; row 0 = scale + 1 (bias-fused), row 1 = shift
    # out_ref: (TL, C)
    x = x_ref[...]
    xf = x.astype(jnp.float32)

    inv_c = jnp.float32(1.0 / x_ref.shape[-1])
    # One-pass statistics over the lane (C) axis, fp32 accumulation.
    mean = jnp.sum(xf, axis=-1, keepdims=True) * inv_c             # (TL, 1)
    mean_sq = jnp.sum(xf * xf, axis=-1, keepdims=True) * inv_c     # (TL, 1)
    var = jnp.maximum(mean_sq - mean * mean, 0.0)                  # guard <0
    inv_std = jax.lax.rsqrt(var + jnp.float32(eps))

    ada = ada_ref[...]                                             # (2, C) f32
    scale1 = ada[0:1, :]                                           # (1, C)
    shift = ada[1:2, :]                                            # (1, C)

    out = (xf - mean) * inv_std * scale1 + shift                   # (TL, C)
    out_ref[...] = out.astype(out_ref.dtype)


# --------------------------------------------------------------------------- #
# Tile / VMEM sizing
# --------------------------------------------------------------------------- #
_VMEM_BUDGET = 32 * 1024 * 1024          # scoped budget safe on v5e/v6e/v7x
_TARGET_BLOCK_BYTES = 4 * 1024 * 1024    # ~4 MiB x-tiles (perf review)


def _vmem_need_bytes(tl, C, itemsize):
    tile_io = tl * C * itemsize          # one x tile == one out tile
    f32_tile = tl * C * 4                # fp32 temporaries from the reduction
    # 2 buffers each for in & out (pipelining) + ~2 f32 temporaries + ada + slack
    return 4 * tile_io + 2 * f32_tile + 2 * (2 * C * 4) + (256 << 10)


def _select_tile_l(L, C, x_dtype, tile_l=None):
    itemsize = jnp.dtype(x_dtype).itemsize
    # dtype-native sublane multiple: 8 (f32), 16 (bf16), 32 (int8/fp8)
    sub = {1: 32, 2: 16, 4: 8}.get(itemsize, 8)

    if tile_l is not None:
        tl = int(tile_l)
        if tl < L:
            tl = max(sub, (tl // sub) * sub)
    else:
        tl = max(sub, (_TARGET_BLOCK_BYTES // max(1, C * itemsize)) // sub * sub)

    # Shrink until the estimated per-call VMEM need fits the scoped budget.
    while tl > sub and _vmem_need_bytes(tl, C, itemsize) > _VMEM_BUDGET:
        tl = max(sub, ((tl // 2) // sub) * sub)

    if tl >= L:
        tl = L
    elif L % tl != 0:
        # Prefer an aligned tile that divides L (avoid a masked partial last
        # block), as long as it doesn't halve the tile size.
        for cand in range(tl, sub - 1, -sub):
            if L % cand == 0:
                if cand * 2 >= tl:
                    tl = cand
                break

    need = _vmem_need_bytes(tl, C, itemsize)
    vmem_limit = int(min(_VMEM_BUDGET, max(16 * 1024 * 1024, need + (4 << 20))))
    return tl, vmem_limit


# --------------------------------------------------------------------------- #
# Wrapper
# --------------------------------------------------------------------------- #
def adaln_before_head(x_BLC, cond_BD, w_D2C, b_2C, *, eps=1e-6, act=True,
                      tile_l=None):
    B, L, C = x_BLC.shape
    D = cond_BD.shape[1]
    assert w_D2C.shape == (D, 2 * C)
    assert b_2C.shape == (2 * C,)

    # --- Hoisted ada_lin projection: one fp32 XLA matmul. -------------------
    c = cond_BD.astype(jnp.float32)
    if act:
        c = c * jax.nn.sigmoid(c)                                  # SiLU
    bias = b_2C.astype(jnp.float32)
    bias = bias.at[:C].add(1.0)            # fuse the "+1" of (scale + 1)
    ada = c @ w_D2C.astype(jnp.float32) + bias[None, :]            # (B, 2C)
    # view(-1, 1, 2, C).unbind(2): row 0 -> scale(+1), row 1 -> shift
    ada = ada.reshape(B, 2, C)                                     # (B, 2, C)

    # --- Tile the sequence axis; keep C whole on the lane axis. -------------
    # TODO(synk): if C % 128 != 0 the output stores are masked (vst.msk);
    # padding C to a lane multiple would need a padded copy of x/out.
    tl, vmem_limit = _select_tile_l(L, C, x_BLC.dtype, tile_l)
    nl = pl.cdiv(L, tl)

    # L-tile axis first so the (usually) large axis is the core-sharded one
    # on v7x megacore; the per-step re-fetch of the tiny (2, C) ada block when
    # b moves in the inner loop is negligible vs the multi-MiB x tiles.
    grid = (nl, B)

    kernel = functools.partial(_adaln_modulate_kernel, eps=eps)

    return pl.pallas_call(
        kernel,
        out_shape=jax.ShapeDtypeStruct((B, L, C), x_BLC.dtype),
        grid_spec=pltpu.PrefetchScalarGridSpec(
            num_scalar_prefetch=0,
            grid=grid,
            in_specs=[
                pl.BlockSpec((pl.Squeezed(), tl, C),
                             lambda l, b: (b, l, 0)),               # x
                pl.BlockSpec((pl.Squeezed(), 2, C),
                             lambda l, b: (b, 0, 0)),               # ada
            ],
            out_specs=pl.BlockSpec((pl.Squeezed(), tl, C),
                                   lambda l, b: (b, l, 0)),
        ),
        compiler_params=pltpu.CompilerParams(
            dimension_semantics=("parallel", "parallel"),
            vmem_limit_bytes=vmem_limit),
    )(x_BLC, ada)


# --------------------------------------------------------------------------- #
# Pure-JAX reference
# --------------------------------------------------------------------------- #
def adaln_before_head_ref(x_BLC, cond_BD, w_D2C, b_2C, *, eps=1e-6, act=True):
    c = cond_BD.astype(jnp.float32)
    if act:
        c = c * jax.nn.sigmoid(c)
    ada = c @ w_D2C.astype(jnp.float32) + b_2C.reshape(1, -1).astype(jnp.float32)
    C = x_BLC.shape[-1]
    scale, shift = ada[:, None, :C], ada[:, None, C:]
    x = x_BLC.astype(jnp.float32)
    mean = x.mean(-1, keepdims=True)
    var = ((x - mean) ** 2).mean(-1, keepdims=True)
    xn = (x - mean) * jax.lax.rsqrt(var + eps)
    return (xn * (scale + 1.0) + shift).astype(x_BLC.dtype)


if __name__ == "__main__":
    # Small shapes consistent with the module: x_BLC = (B, L, C), cond_BD = (B, D)
    B, L, C, D = 2, 8, 32, 16
    eps = 1e-6
    act = True

    key = jax.random.PRNGKey(0)
    kx, kc, kw, kb = jax.random.split(key, 4)

    x_BLC = jax.random.normal(kx, (B, L, C), dtype=jnp.float32)
    cond_BD = jax.random.normal(kc, (B, D), dtype=jnp.float32)
    # nn.Linear(D, 2C): weight (2C, D), bias (2C). Store weight transposed (D, 2C).
    w_D2C = (jax.random.normal(kw, (D, 2 * C), dtype=jnp.float32)
             * (1.0 / jnp.sqrt(D)))
    b_2C = jax.random.normal(kb, (2 * C,), dtype=jnp.float32) * 0.02

    out = adaln_before_head(x_BLC, cond_BD, w_D2C, b_2C, eps=eps, act=act)
    out = jax.block_until_ready(out)

    ref = adaln_before_head_ref(x_BLC, cond_BD, w_D2C, b_2C, eps=eps, act=act)
    assert out.shape == (B, L, C)
    assert jnp.allclose(out, ref, atol=1e-4, rtol=1e-4), "mismatch vs reference"

    print("KERNEL_OK")
</pallas_src>

<mosaic_0001>
module attributes {stable_mosaic.version = 11 : i64} {
  func.func @_adaln_modulate_kernel(%arg0: i32, %arg1: i32, %arg2: memref<1x8x32xf32, #tpu.memory_space<vmem>>, %arg3: memref<1x2x32xf32, #tpu.memory_space<vmem>>, %arg4: memref<1x8x32xf32, #tpu.memory_space<vmem>>) attributes {dimension_semantics = [#tpu.dimension_semantics<parallel>, #tpu.dimension_semantics<parallel>], iteration_bounds = array<i64: 1, 2>, scalar_prefetch = 0 : i64, scratch_operands = 0 : i64, tpu.core_type = #tpu.core_type<tc>, window_params = [{transform_indices = @transform_0, window_bounds = array<i64: 1, 8, 32>}, {transform_indices = @transform_1, window_bounds = array<i64: 1, 2, 32>}, {transform_indices = @transform_2, window_bounds = array<i64: 1, 8, 32>}]} {
    %c0 = arith.constant 0 : index
    %c0_0 = arith.constant 0 : index
    %c0_1 = arith.constant 0 : index
    %0 = vector.load %arg2[%c0, %c0_0, %c0_1] : memref<1x8x32xf32, #tpu.memory_space<vmem>>, vector<1x8x32xf32>
    %1 = vector.shape_cast %0 : vector<1x8x32xf32> to vector<8x32xf32>
    %cst = arith.constant dense<0.000000e+00> : vector<8xf32>
    %2 = vector.multi_reduction <add>, %1, %cst [1] : vector<8x32xf32> to vector<8xf32>
    %3 = vector.shape_cast %2 : vector<8xf32> to vector<8x1xf32>
    %cst_2 = arith.constant 3.125000e-02 : f32
    %4 = vector.broadcast %cst_2 : f32 to vector<8x1xf32>
    %5 = arith.mulf %3, %4 : vector<8x1xf32>
    %6 = arith.mulf %1, %1 : vector<8x32xf32>
    %cst_3 = arith.constant dense<0.000000e+00> : vector<8xf32>
    %7 = vector.multi_reduction <add>, %6, %cst_3 [1] : vector<8x32xf32> to vector<8xf32>
    %8 = vector.shape_cast %7 : vector<8xf32> to vector<8x1xf32>
    %cst_4 = arith.constant 3.125000e-02 : f32
    %9 = vector.broadcast %cst_4 : f32 to vector<8x1xf32>
    %10 = arith.mulf %8, %9 : vector<8x1xf32>
    %11 = arith.mulf %5, %5 : vector<8x1xf32>
    %12 = arith.subf %10, %11 : vector<8x1xf32>
    %cst_5 = arith.constant 0.000000e+00 : f32
    %13 = vector.broadcast %cst_5 : f32 to vector<8x1xf32>
    %14 = arith.maximumf %12, %13 : vector<8x1xf32>
    %cst_6 = arith.constant 9.99999997E-7 : f32
    %15 = vector.broadcast %cst_6 : f32 to vector<8x1xf32>
    %16 = arith.addf %14, %15 : vector<8x1xf32>
    %17 = math.rsqrt %16 : vector<8x1xf32>
    %c0_7 = arith.constant 0 : index
    %c0_8 = arith.constant 0 : index
    %c0_9 = arith.constant 0 : index
    %18 = vector.load %arg3[%c0_7, %c0_8, %c0_9] : memref<1x2x32xf32, #tpu.memory_space<vmem>>, vector<1x2x32xf32>
    %19 = vector.shape_cast %18 : vector<1x2x32xf32> to vector<2x32xf32>
    %20 = vector.extract_strided_slice %19 {offsets = [0, 0], sizes = [1, 32], strides = [1, 1]} : vector<2x32xf32> to vector<1x32xf32>
    %21 = vector.extract_strided_slice %19 {offsets = [1, 0], sizes = [1, 32], strides = [1, 1]} : vector<2x32xf32> to vector<1x32xf32>
    %22 = vector.broadcast %5 : vector<8x1xf32> to vector<8x32xf32>
    %23 = arith.subf %1, %22 : vector<8x32xf32>
    %24 = vector.broadcast %17 : vector<8x1xf32> to vector<8x32xf32>
    %25 = arith.mulf %23, %24 : vector<8x32xf32>
    %26 = vector.broadcast %20 : vector<1x32xf32> to vector<8x32xf32>
    %27 = arith.mulf %25, %26 : vector<8x32xf32>
    %28 = vector.broadcast %21 : vector<1x32xf32> to vector<8x32xf32>
    %29 = arith.addf %27, %28 : vector<8x32xf32>
    %c0_10 = arith.constant 0 : index
    %c0_11 = arith.constant 0 : index
    %c0_12 = arith.constant 0 : index
    %30 = vector.load %arg4[%c0_10, %c0_11, %c0_12] : memref<1x8x32xf32, #tpu.memory_space<vmem>>, vector<1x8x32xf32>
    %31 = vector.shape_cast %30 : vector<1x8x32xf32> to vector<8x32xf32>
    %32 = vector.shape_cast %29 : vector<8x32xf32> to vector<1x8x32xf32>
    tpu.vector_store %arg4[%c0_10, %c0_11, %c0_12], %32 {strides = array<i32>} : memref<1x8x32xf32, #tpu.memory_space<vmem>>, vector<1x8x32xf32>,
    return
  }
  func.func @transform_0(%arg0: i32, %arg1: i32) -> (i32, i32, i32) {
    %c0_i32 = arith.constant 0 : i32
    %c0_i32_0 = arith.constant 0 : i32
    return %arg1, %arg0, %c0_i32 : i32, i32, i32
  }
  func.func @transform_1(%arg0: i32, %arg1: i32) -> (i32, i32, i32) {
    %c0_i32 = arith.constant 0 : i32
    %c0_i32_0 = arith.constant 0 : i32
    %c0_i32_1 = arith.constant 0 : i32
    return %arg1, %c0_i32, %c0_i32_0 : i32, i32, i32
  }
  func.func @transform_2(%arg0: i32, %arg1: i32) -> (i32, i32, i32) {
    %c0_i32 = arith.constant 0 : i32
    %c0_i32_0 = arith.constant 0 : i32
    return %arg1, %arg0, %c0_i32 : i32, i32, i32
  }
}

</mosaic_0001>

<llo_original>
// kernel: tpu_custom_call.1
$region0: #{tpu_custom_call.1}
  #allocation0 [shape = 'u32[]', space=smem, size = 0x4, offset = 0x4, fixed_abs, tag = 'smem constant byte address 0x4 - core index']
  #allocation1 [shape = 'u32[144,128]{1,0:T(1,128)}', space=vmem, size = 0x12000, scoped, tag = 'internal scratch']
  %s0 = inlined_call_operand.hbm [shape: f32[2,8,32], index: 0, kind: input, shape index: {}]
  %s1 = inlined_call_operand.hbm [shape: f32[2,2,32], index: 1, kind: input, shape index: {}]
  %s2 = inlined_call_operand.hbm [shape: f32[2,8,32], index: 2, kind: output, shape index: {}]
  %s3 = sld [smem:[#allocation0]]
  $region49: #{tpu_custom_call.1} parent=0
    _
  %s5 = ssub.s32 1, %s3
  %s6 = scalar_select 0, %s5, %s3
  $region1: #{tpu_custom_call.1} parent=0
    #allocation2 [shape = 'u8[8192]{0}', space=vmem, size = 0x2000, scoped, tag = 'input window, operand 0']
    #allocation3 [shape = 's32[2]{0}', space=sflag, size = 0x8, scoped, tag = 'scoped memory for tpu_custom_call.1']
    #allocation4 [shape = 's32[2]{0}', space=sflag, size = 0x8, scoped, tag = 'scoped memory for tpu_custom_call.1']
    #allocation5 [shape = 'u8[2048]{0}', space=vmem, size = 0x800, scoped, tag = 'input window, operand 1']
    #allocation6 [shape = 's32[2]{0}', space=sflag, size = 0x8, scoped, tag = 'scoped memory for tpu_custom_call.1']
    #allocation7 [shape = 'u8[8192]{0}', space=vmem, size = 0x2000, scoped, tag = 'output window, operand 0']
    %7 = vsyncpa [#allocation3], 0
    %s8 = scalar_lea.sflag [#allocation3], 1
    %9 = vsyncpa %s8, 0
    %10 = vsyncpa [#allocation6], 0
    %s11 = scalar_lea.sflag [#allocation6], 1
    %12 = vsyncpa %s11, 0
    %13 = vsyncpa [#allocation4], 0
    %s14 = scalar_lea.sflag [#allocation4], 1
    %15 = vsyncpa %s14, 0
    loop: start=0, step=1, limit=4
    $region2: #{tpu_custom_call.1} parent=1 // loop_pre_header
      _
    $region3: #{tpu_custom_call.1} parent=1 // loop_header
      %s17 = sphi 0, %s21
      %p18 = scmp.ge.s32.totalorder %s17, 4
      %s24 = sphi 0, %s36
      %s25 = sphi 0, %s32
      %s26 = sphi 0, %s24
      %s27 = sphi 0, %s25
      %s28 = sphi 0, %s26
      %s29 = sphi 0, %s27
      %s41 = sphi 0, %s43
      %s44 = sphi 0, %s41
      %s45 = sphi 0, %s44
      %s61 = sphi 0, %s45
      %s67 = sphi 0, %s69
      %s70 = sphi 0, %s67
      %s71 = sphi 0, %s70
      %s87 = sphi 0, %s71
      %s95 = sphi 0, %s97
      %s98 = sphi 0, %s95
      %s99 = sphi 0, %s98
      %s115 = sphi 0, %s99
    $region4: #{tpu_custom_call.1} parent=1 // loop_header_branch
      %20 = sbr.rel (%p18) target = $region8
    $region5: #{tpu_custom_call.1} parent=1 // loop_body
      %s22 = ssub.s32 %s17, 1
      %s23 = ssub.s32 %s17, 2
      %s30 = sadd.s32 1, %s25
      %p31 = scmp.ge.s32.totalorder %s30, 2
      %s32 = scalar_select %p31, 0, %s30
      %s33 = sadd.s32 1, %s24
      %s34 = scalar_select %p31, %s33, %s24
      %p35 = scmp.ge.s32.totalorder %s34, 1
      %s36 = scalar_select %p35, 0, %s34
      %s37 = ssub.s32 %s25, %s32
      %s38 = ssub.s32 %s24, %s36
      %s39 = sor.u32 %s37, %s38
      %p40 = scmp.eq.s32.totalorder %s39, 0
      %s42 = sadd.s32 %s41, 1
      %s43 = scalar_select %p40, %s41, %s42
      %p46 = pneg %p40
      %p47 = scmp.eq.s32.totalorder %s17, 1
      %p48 = por %p46, %p47
      %p49 = scmp.ne.s32.totalorder %s41, %s44
      %p50 = scmp.eq.s32.totalorder %s17, 0
      %p51 = por %p49, %p50
      %p52 = scmp.ne.s32.totalorder %s41, %s44
      %p53 = scmp.eq.s32.totalorder %s22, 1
      %p54 = por %p52, %p53
      %p55 = scmp.ne.s32.totalorder %s44, %s45
      %p56 = scmp.eq.s32.totalorder %s22, 0
      %p57 = por %p55, %p56
      %p58 = scmp.ne.s32.totalorder %s44, %s45
      %p59 = scmp.eq.s32.totalorder %s23, 1
      %p60 = por %p58, %p59
      %p62 = scmp.ne.s32.totalorder %s45, %s61
      %p63 = scmp.eq.s32.totalorder %s23, 0
      %p64 = por %p62, %p63
      %s65 = ssub.s32 %s25, %s32
      %p66 = scmp.eq.s32.totalorder %s65, 0
      %s68 = sadd.s32 %s67, 1
      %s69 = scalar_select %p66, %s67, %s68
      %p72 = pneg %p66
      %p73 = scmp.eq.s32.totalorder %s17, 1
      %p74 = por %p72, %p73
      %p75 = scmp.ne.s32.totalorder %s67, %s70
      %p76 = scmp.eq.s32.totalorder %s17, 0
      %p77 = por %p75, %p76
      %p78 = scmp.ne.s32.totalorder %s67, %s70
      %p79 = scmp.eq.s32.totalorder %s22, 1
      %p80 = por %p78, %p79
      %p81 = scmp.ne.s32.totalorder %s70, %s71
      %p82 = scmp.eq.s32.totalorder %s22, 0
      %p83 = por %p81, %p82
      %p84 = scmp.ne.s32.totalorder %s70, %s71
      %p85 = scmp.eq.s32.totalorder %s23, 1
      %p86 = por %p84, %p85
      %p88 = scmp.ne.s32.totalorder %s71, %s87
      %p89 = scmp.eq.s32.totalorder %s23, 0
      %p90 = por %p88, %p89
      %s91 = ssub.s32 %s25, %s32
      %s92 = ssub.s32 %s24, %s36
      %s93 = sor.u32 %s91, %s92
      %p94 = scmp.eq.s32.totalorder %s93, 0
      %s96 = sadd.s32 %s95, 1
      %s97 = scalar_select %p94, %s95, %s96
      %p100 = pneg %p94
      %p101 = scmp.eq.s32.totalorder %s17, 1
      %p102 = por %p100, %p101
      %p103 = scmp.ne.s32.totalorder %s95, %s98
      %p104 = scmp.eq.s32.totalorder %s17, 0
      %p105 = por %p103, %p104
      %p106 = scmp.ne.s32.totalorder %s95, %s98
      %p107 = scmp.eq.s32.totalorder %s22, 1
      %p108 = por %p106, %p107
      %p109 = scmp.ne.s32.totalorder %s98, %s99
      %p110 = scmp.eq.s32.totalorder %s22, 0
      %p111 = por %p109, %p110
      %p112 = scmp.ne.s32.totalorder %s98, %s99
      %p113 = scmp.eq.s32.totalorder %s23, 1
      %p114 = por %p112, %p113
      %p116 = scmp.ne.s32.totalorder %s99, %s115
      %p117 = scmp.eq.s32.totalorder %s23, 0
      %p118 = por %p116, %p117
      %p119 = scmp.le.s32.totalorder 1, %s17
      %p120 = scmp.lt.s32.totalorder %s17, 3
      %p121 = pnand %p119, %p120
      %p122 = pneg %p121
      // Predicated region
      $region9: #{tpu_custom_call.1} parent=5 // pred_check
        _
      $region10: #{tpu_custom_call.1} parent=5 // pred_check_branch
        %124 = sbr.rel (%p121) target = $region12
      $region11: #{tpu_custom_call.1} parent=5 // pred_region
        %s125 = ssub.s32 %s17, 1
      $region12: #{tpu_custom_call.1} parent=5 // pred_fallthru
        _
      %p126 = scmp.lt.s32.totalorder %s17, 2
      // Predicated region
      $region13: #{tpu_custom_call.1} parent=5 // pred_check
        %p127 = pneg %p126
      $region14: #{tpu_custom_call.1} parent=5 // pred_check_branch
        %129 = sbr.rel (%p127) target = $region16
      $region15: #{tpu_custom_call.1} parent=5 // pred_region
        // Predicated region
        $region17: #{tpu_custom_call.1} parent=15 // pred_check
          %p130 = pneg %p51
        $region18: #{tpu_custom_call.1} parent=15 // pred_check_branch
          %132 = sbr.rel (%p130) target = $region20
        $region19: #{tpu_custom_call.1} parent=15 // pred_region
          %s133 = sand.u32 %s41, 1
          %s134 = scalar_lea.sflag [#allocation3], %s133
          %s135 = sand.u32 %s41, 1
          %s136 = smul.addr %s135, 8
          %s137 = scalar_lea.vmem [#allocation2], %s136
          %s139 = ssub.s32 128, 128
          %140 = vsyncadd %s134, %s139
          %s141 = sadd.s32 %s24, %s25
          %s142 = smul.addr %s141, 128
          %s143 = scalar_lea.hbm %s0, %s142
          %s145 = sshll.u32 %s137, 4
          %s146 = int_to_ptr.vmem [resolvable:$true] %s145
          %148 = dma.hbm_to_vmem [thread:$0]  %s143, 128, %s146, %s134
        $region20: #{tpu_custom_call.1} parent=15 // pred_fallthru
          _
        // Predicated region
        $region21: #{tpu_custom_call.1} parent=15 // pred_check
          %p149 = pneg %p77
        $region22: #{tpu_custom_call.1} parent=15 // pred_check_branch
          %151 = sbr.rel (%p149) target = $region24
        $region23: #{tpu_custom_call.1} parent=15 // pred_region
          %s152 = sand.u32 %s67, 1
          %s153 = scalar_lea.sflag [#allocation6], %s152
          %s154 = sand.u32 %s67, 1
          %s155 = smul.addr %s154, 2
          %s156 = scalar_lea.vmem [#allocation5], %s155
          %s158 = ssub.s32 32, 32
          %159 = vsyncadd %s153, %s158
          %s160 = smul.addr %s25, 32
          %s161 = scalar_lea.hbm %s1, %s160
          %s163 = sshll.u32 %s156, 4
          %s164 = int_to_ptr.vmem [resolvable:$true] %s163
          %166 = dma.hbm_to_vmem [thread:$0]  %s161, 32, %s164, %s153
        $region24: #{tpu_custom_call.1} parent=15 // pred_fallthru
          _
      $region16: #{tpu_custom_call.1} parent=5 // pred_fallthru
        _
      %p167 = scmp.le.s32.totalorder 1, %s17
      %p168 = scmp.lt.s32.totalorder %s17, 3
      %p169 = pnand %p167, %p168
      %p170 = pneg %p169
      // Predicated region
      $region25: #{tpu_custom_call.1} parent=5 // pred_check
        _
      $region26: #{tpu_custom_call.1} parent=5 // pred_check_branch
        %172 = sbr.rel (%p169) target = $region28
      $region27: #{tpu_custom_call.1} parent=5 // pred_region
        %s173 = ssub.s32 %s17, 1
        %s174 = sand.u32 %s44, 1
        %s175 = scalar_lea.sflag [#allocation3], %s174
        %s176 = sand.u32 %s44, 1
        %s177 = smul.addr %s176, 8
        %s178 = scalar_lea.vmem [#allocation2], %s177
        // Predicated region
        $region29: #{tpu_custom_call.1} parent=27 // pred_check
          %p179 = pneg %p57
        $region30: #{tpu_custom_call.1} parent=27 // pred_check_branch
          %181 = sbr.rel (%p179) target = $region32
        $region31: #{tpu_custom_call.1} parent=27 // pred_region
          %182 = dma.done %s175, 128
        $region32: #{tpu_custom_call.1} parent=27 // pred_fallthru
          _
        %s183 = sand.u32 %s70, 1
        %s184 = scalar_lea.sflag [#allocation6], %s183
        %s185 = sand.u32 %s70, 1
        %s186 = smul.addr %s185, 2
        %s187 = scalar_lea.vmem [#allocation5], %s186
        // Predicated region
        $region33: #{tpu_custom_call.1} parent=27 // pred_check
          %p188 = pneg %p83
        $region34: #{tpu_custom_call.1} parent=27 // pred_check_branch
          %190 = sbr.rel (%p188) target = $region36
        $region35: #{tpu_custom_call.1} parent=27 // pred_region
          %191 = dma.done %s184, 32
        $region36: #{tpu_custom_call.1} parent=27 // pred_fallthru
          _
        %s192 = sand.u32 %s44, 1
        %s193 = scalar_lea.sflag [#allocation3], %s192
        %s194 = sand.u32 %s44, 1
        %s195 = smul.addr %s194, 8
        %s196 = scalar_lea.vmem [#allocation2], %s195
        %p197 = pneg %p57
        %p198 = pneg %p54
        %s199 = sand.u32 %s70, 1
        %s200 = scalar_lea.sflag [#allocation6], %s199
        %s201 = sand.u32 %s70, 1
        %s202 = smul.addr %s201, 2
        %s203 = scalar_lea.vmem [#allocation5], %s202
        %p204 = pneg %p83
        %p205 = pneg %p80
        %p206 = pneg %p111
        %p207 = pneg %p108
        %s208 = sand.u32 %s98, 1
        %s209 = scalar_lea.sflag [#allocation4], %s208
        %s210 = sand.u32 %s98, 1
        %s211 = smul.addr %s210, 8
        %s212 = scalar_lea.vmem [#allocation7], %s211
        %v213 = vld [vmem:[%s178] sm:$0xff]
        %vm214 = vcmask 261120
        %v215 = vsel %vm214, %v213, 0.0
        %216 = vadd.xlane.f32.xlu0 %v215
        %v217 = vpop.xlane.xlu0 %216
        %v218 = vmul.f32 %v217, 0.03125
        %v219 = vmul.f32 %v213, %v213
        %v220 = vsel %vm214, %v219, 0.0
        %221 = vadd.xlane.f32.xlu0 %v220
        %v222 = vpop.xlane.xlu0 %221
        %v223 = vmul.f32 %v222, 0.03125
        %v224 = vmul.f32 %v218, %v218
        %v225 = vsub.f32 %v223, %v224
        %v226 = vmax.f32 %v225, 0.0
        %v227 = vadd.f32 %v226, 1e-06
        %v228 = vrsqrt.pop %v227
        %v229 = vld [vmem:[%s187] sm:$0x3]
        %v230 = vsub.f32 %v213, %v218
        %v231 = vmul.f32 %v230, %v228
        %v232 = vlaneseq
        %v233 = vshrl.u32 %v232, 7
        %v234 = vsub.s32 0, %v233
        %v235 = vrot.slane %v229, %v234
        %v236 = vmul.f32 %v231, %v235
        %v237 = vlaneseq
        %v238 = vshrl.u32 %v237, 7
        %v239 = vsub.s32 1, %v238
        %v240 = vrot.slane %v229, %v239
        %v241 = vadd.f32 %v236, %v240
        %242 = vst.msk [vmem:[%s212] sm:$0xff] %vm214, %v241
        %s243 = sand.u32 %s98, 1
        %s244 = scalar_lea.sflag [#allocation4], %s243
        %s245 = sand.u32 %s98, 1
        %s246 = smul.addr %s245, 8
        %s247 = scalar_lea.vmem [#allocation7], %s246
        // Predicated region
        $region37: #{tpu_custom_call.1} parent=27 // pred_check
          %p248 = pneg %p108
        $region38: #{tpu_custom_call.1} parent=27 // pred_check_branch
          %250 = sbr.rel (%p248) target = $region40
        $region39: #{tpu_custom_call.1} parent=27 // pred_region
          %s252 = ssub.s32 128, 128
          %253 = vsyncadd %s244, %s252
          %s254 = sadd.s32 %s26, %s27
          %s255 = smul.addr %s254, 128
          %s256 = scalar_lea.hbm %s2, %s255
          %s258 = sshll.u32 %s247, 4
          %s259 = int_to_ptr.vmem [resolvable:$true] %s258
          %261 = dma.vmem_to_hbm [thread:$0]  %s259, 128, %s256, %s244
        $region40: #{tpu_custom_call.1} parent=27 // pred_fallthru
          _
      $region28: #{tpu_custom_call.1} parent=5 // pred_fallthru
        _
      %p262 = scmp.le.s32.totalorder 2, %s17
      // Predicated region
      $region41: #{tpu_custom_call.1} parent=5 // pred_check
        %p263 = pneg %p262
      $region42: #{tpu_custom_call.1} parent=5 // pred_check_branch
        %265 = sbr.rel (%p263) target = $region44
      $region43: #{tpu_custom_call.1} parent=5 // pred_region
        %s266 = ssub.s32 %s17, 2
        // Predicated region
        $region45: #{tpu_custom_call.1} parent=43 // pred_check
          %p267 = pneg %p114
        $region46: #{tpu_custom_call.1} parent=43 // pred_check_branch
          %269 = sbr.rel (%p267) target = $region48
        $region47: #{tpu_custom_call.1} parent=43 // pred_region
          %s270 = sand.u32 %s99, 1
          %s271 = scalar_lea.sflag [#allocation4], %s270
          %s272 = sand.u32 %s99, 1
          %s273 = smul.addr %s272, 8
          %s274 = scalar_lea.vmem [#allocation7], %s273
          %275 = dma.done %s271, 128
        $region48: #{tpu_custom_call.1} parent=43 // pred_fallthru
          _
      $region44: #{tpu_custom_call.1} parent=5 // pred_fallthru
        _
    $region6: #{tpu_custom_call.1} parent=1 // loop_footer
      %s21 = sadd.s32 1, %s17
    $region7: #{tpu_custom_call.1} parent=1 // loop_footer_branch
      %16 = sbr.rel target = $region3
    $region8: #{tpu_custom_call.1} parent=1 // loop_exit
      _
    %276 = vsyncpa [#allocation3], 1
    %s277 = scalar_lea.sflag [#allocation3], 1
    %278 = vsyncpa %s277, 1
    %279 = vsyncpa [#allocation6], 1
    %s280 = scalar_lea.sflag [#allocation6], 1
    %281 = vsyncpa %s280, 1
    %282 = vsyncpa [#allocation4], 1
    %s283 = scalar_lea.sflag [#allocation4], 1
    %284 = vsyncpa %s283, 1

</llo_original>
